<compile_context>
chip_gen: v5e
topology: v5e:2x2
jax: 0.10.0
libtpu: 0.0.40
codegen_flags: <defaults>
</compile_context>

<pallas_src>
import functools

import jax
import jax.numpy as jnp
from jax.experimental import pallas as pl
from jax.experimental.pallas import tpu as pltpu


# --------------------------- per-generation configuration --------------------------- #

def _device_config():
    """Pick VMEM limit and row-tile target per TPU generation."""
    vmem_bytes = None
    try:
        info = pltpu.get_tpu_info()
        vmem_bytes = getattr(info, "vmem_capacity_bytes", None)
    except Exception:
        vmem_bytes = None
    if vmem_bytes is None:
        vmem_bytes = 64 * 1024 * 1024  # conservative default (v7x-sized)
    if vmem_bytes >= 100 * 1024 * 1024:
        # v5e / v6e: 128 MiB physical VMEM per TensorCore.
        return {"vmem_limit": 96 * 1024 * 1024, "tm_target": 512}
    # v7x: 64 MiB per TensorCore.
    return {"vmem_limit": 48 * 1024 * 1024, "tm_target": 256}


_CFG = _device_config()


def _compiler_params(n_parallel_axes):
    return pltpu.CompilerParams(
        dimension_semantics=("parallel",) * n_parallel_axes,
        vmem_limit_bytes=_CFG["vmem_limit"])


def _round_down_8(v):
    return max(8, (v // 8) * 8)


def _pick_tm(M, K, N, act_itemsize, w_itemsize, has_residual):
    """Row (sublane) block size: full M, or a large 8-multiple that fits VMEM."""
    target = _CFG["tm_target"]
    if M <= target:
        return M  # full array dim is always a legal block dim
    tm = _round_down_8(target)
    budget = int(_CFG["vmem_limit"] * 0.75)

    def est(t):
        e = 2 * K * N * w_itemsize           # (double-buffered) resident weight
        e += 2 * t * K * act_itemsize        # double-buffered activation slab
        e += 2 * t * N * act_itemsize        # double-buffered output slab
        if has_residual:
            e += 2 * t * N * act_itemsize
        e += t * N * 4 + t * K * 4           # f32 intermediates (LN / accumulate)
        return e

    while tm > 8 and est(tm) > budget:
        tm = _round_down_8(tm // 2)
    return tm


# --------------------- fused LN + matmul + bias + act + residual -------------------- #

def _make_fused_kernel(*, has_ln, has_bias, has_residual, activation, eps):
    def kernel(*refs):
        idx = 0
        x_ref = refs[idx]; idx += 1
        if has_ln:
            g_ref = refs[idx]; bln_ref = refs[idx + 1]; idx += 2
        w_ref = refs[idx]; idx += 1
        if has_bias:
            b_ref = refs[idx]; idx += 1
        if has_residual:
            r_ref = refs[idx]; idx += 1
        o_ref = refs[idx]

        x = x_ref[...]
        if has_ln:
            # CLIP LayerNorm: fp32 math, cast back so the MXU sees the compute dtype.
            xf = x.astype(jnp.float32)
            mean = jnp.mean(xf, axis=-1, keepdims=True)
            var = jnp.mean(jnp.square(xf - mean), axis=-1, keepdims=True)
            xf = (xf - mean) * jax.lax.rsqrt(var + eps)
            xf = xf * g_ref[...].astype(jnp.float32) + bln_ref[...].astype(jnp.float32)
            x = xf.astype(x_ref.dtype)

        # MXU matmul in the input dtype, fp32 accumulation.
        y = jnp.dot(x, w_ref[...], preferred_element_type=jnp.float32)
        if has_bias:
            y = y + b_ref[...].astype(jnp.float32)
        if activation == "quick_gelu":
            y = y * jax.nn.sigmoid(1.702 * y)
        if has_residual:
            y = y + r_ref[...].astype(jnp.float32)
        o_ref[...] = y.astype(o_ref.dtype)

    return kernel


def fused_matmul(x, w, b=None, *, ln_g=None, ln_b=None, residual=None,
                 activation=None, eps=1e-5):
    """y = [residual +] act(LN(x) @ w + b).  x: (M, K), w: (K, N).

    Grid is 1-D over rows; the (K, N) weight block is resident (constant block
    index), so each weight is DMA'd once and the fused LN runs once per row tile.
    """
    M, K = x.shape
    N = w.shape[1]
    tm = _pick_tm(M, K, N, x.dtype.itemsize, w.dtype.itemsize, residual is not None)
    grid = (pl.cdiv(M, tm),)

    inputs = [x]
    in_specs = [pl.BlockSpec((tm, K), lambda i: (i, 0))]
    if ln_g is not None:
        inputs += [ln_g.reshape(1, K), ln_b.reshape(1, K)]
        in_specs += [pl.BlockSpec((1, K), lambda i: (0, 0)),
                     pl.BlockSpec((1, K), lambda i: (0, 0))]
    inputs.append(w)
    in_specs.append(pl.BlockSpec((K, N), lambda i: (0, 0)))       # VMEM-resident weight
    if b is not None:
        inputs.append(b.reshape(1, N))
        in_specs.append(pl.BlockSpec((1, N), lambda i: (0, 0)))
    if residual is not None:
        inputs.append(residual)
        in_specs.append(pl.BlockSpec((tm, N), lambda i: (i, 0)))

    kern = _make_fused_kernel(has_ln=ln_g is not None, has_bias=b is not None,
                              has_residual=residual is not None,
                              activation=activation, eps=eps)
    return pl.pallas_call(
        kern,
        grid=grid,
        out_shape=jax.ShapeDtypeStruct((M, N), x.dtype),
        in_specs=in_specs,
        out_specs=pl.BlockSpec((tm, N), lambda i: (i, 0)),
        compiler_params=_compiler_params(1),
    )(*inputs)


# ----------------- cls-token concat + positional embedding + ln_pre ----------------- #

def _embed_ln_kernel(patch_ref, cls_ref, pos_ref, g_ref, b_ref, o_ref, *, eps):
    pe = patch_ref[0].astype(jnp.float32)                  # (P, width)
    cls = cls_ref[...].astype(jnp.float32)                 # (1, width)
    pos = pos_ref[...].astype(jnp.float32)                 # (L, width)
    x = jnp.concatenate([cls, pe], axis=0) + pos           # (L, width), fp32
    mean = jnp.mean(x, axis=-1, keepdims=True)
    var = jnp.mean(jnp.square(x - mean), axis=-1, keepdims=True)
    y = (x - mean) * jax.lax.rsqrt(var + eps)
    y = y * g_ref[...].astype(jnp.float32) + b_ref[...].astype(jnp.float32)
    o_ref[0] = y.astype(o_ref.dtype)


def embed_ln_pre(patch_emb, cls, pos, g, b, eps=1e-5):
    """concat([cls, patch_emb], axis=1) + pos_embed, then LayerNorm — one fused pass."""
    B, P, width = patch_emb.shape
    L = P + 1
    return pl.pallas_call(
        functools.partial(_embed_ln_kernel, eps=eps),
        grid=(B,),
        out_shape=jax.ShapeDtypeStruct((B, L, width), patch_emb.dtype),
        in_specs=[pl.BlockSpec((1, P, width), lambda i: (i, 0, 0)),
                  pl.BlockSpec((1, width), lambda i: (0, 0)),
                  pl.BlockSpec((L, width), lambda i: (0, 0)),
                  pl.BlockSpec((1, width), lambda i: (0, 0)),
                  pl.BlockSpec((1, width), lambda i: (0, 0))],
        out_specs=pl.BlockSpec((1, L, width), lambda i: (i, 0, 0)),
        compiler_params=_compiler_params(1),
    )(patch_emb, cls.reshape(1, width), pos, g.reshape(1, width), b.reshape(1, width))


# ----------------------------------- attention -------------------------------------- #

def _attention_kernel(qkv_ref, o_ref, *, heads, head_dim, scale):
    width = heads * head_dim
    qkv = qkv_ref[0]                                       # (L, 3*width), lane-dense
    L = qkv.shape[0]

    def split(col):
        h = qkv[:, col:col + width].reshape(L, heads, head_dim)
        return jnp.transpose(h, (1, 0, 2))                 # (heads, L, head_dim)

    q = split(0)
    k = split(width)
    v = split(2 * width)

    # Batched over heads: one (heads, L, L) f32 score tensor live at a time.
    s = jnp.einsum("hqd,hkd->hqk", q, k,
                   preferred_element_type=jnp.float32) * scale
    s = s - jnp.max(s, axis=-1, keepdims=True)
    p = jnp.exp(s)                                          # f32 softmax math
    # approx reciprocal uses the EUP slot; ~1e-3 rel. error vs exact division.
    p = p * pl.reciprocal(jnp.sum(p, axis=-1, keepdims=True), approx=True)
    o = jnp.einsum("hqk,hkd->hqd", p.astype(qkv.dtype), v,
                   preferred_element_type=jnp.float32)      # (heads, L, head_dim)
    # Single lane-dense (L, width) store (one vst stream; friendly to v5e's 1 vst slot).
    o = jnp.transpose(o, (1, 0, 2)).reshape(L, width)
    o_ref[0] = o.astype(o_ref.dtype)


def multihead_attention(qkv, heads, scale):
    """qkv: (B, L, 3*width) un-transposed; returns (B, L, width)."""
    B, L, three_w = qkv.shape
    width = three_w // 3
    head_dim = width // heads
    kern = functools.partial(_attention_kernel, heads=heads,
                             head_dim=head_dim, scale=scale)
    # TODO(synk): on v7x a second parallel grid axis over 128-aligned head groups
    # would give finer-grain dual-TC work when B is small.
    return pl.pallas_call(
        kern,
        grid=(B,),
        out_shape=jax.ShapeDtypeStruct((B, L, width), qkv.dtype),
        in_specs=[pl.BlockSpec((1, L, three_w), lambda i: (i, 0, 0))],
        out_specs=pl.BlockSpec((1, L, width), lambda i: (i, 0, 0)),
        compiler_params=_compiler_params(1),
    )(qkv)


# ------------------------------ parameters & forward -------------------------------- #

def init_params(key, *, input_resolution, patch_size, width, layers, heads,
                output_dim, num_classes):
    num_patches = (input_resolution // patch_size) ** 2
    seq = num_patches + 1                      # prompt_pool=False -> no prompt tokens
    scale = width ** -0.5
    keys = jax.random.split(key, 5 + layers)
    p = {}
    p["conv1_w"] = 0.02 * jax.random.normal(
        keys[0], (width, 3, patch_size, patch_size), jnp.float32)
    p["class_embedding"] = scale * jax.random.normal(keys[1], (width,), jnp.float32)
    p["positional_embedding"] = scale * jax.random.normal(keys[2], (seq, width), jnp.float32)
    p["ln_pre_g"] = jnp.ones((width,), jnp.float32)
    p["ln_pre_b"] = jnp.zeros((width,), jnp.float32)
    p["ln_post_g"] = jnp.ones((width,), jnp.float32)
    p["ln_post_b"] = jnp.zeros((width,), jnp.float32)
    p["proj"] = scale * jax.random.normal(keys[3], (width, output_dim), jnp.float32)
    p["fc_norm_g"] = jnp.ones((output_dim,), jnp.float32)
    p["fc_norm_b"] = jnp.zeros((output_dim,), jnp.float32)
    p["head_w"] = 0.02 * jax.random.normal(keys[4], (output_dim, num_classes), jnp.float32)
    p["head_b"] = jnp.zeros((num_classes,), jnp.float32)

    blocks = []
    for l in range(layers):
        bk = jax.random.split(keys[5 + l], 4)
        blocks.append({
            "ln1_g": jnp.ones((width,), jnp.float32),
            "ln1_b": jnp.zeros((width,), jnp.float32),
            "ln2_g": jnp.ones((width,), jnp.float32),
            "ln2_b": jnp.zeros((width,), jnp.float32),
            "qkv_w": 0.02 * jax.random.normal(bk[0], (width, 3 * width), jnp.float32),
            "qkv_b": jnp.zeros((3 * width,), jnp.float32),
            "out_w": 0.02 * jax.random.normal(bk[1], (width, width), jnp.float32),
            "out_b": jnp.zeros((width,), jnp.float32),
            "fc_w": 0.02 * jax.random.normal(bk[2], (width, 4 * width), jnp.float32),
            "fc_b": jnp.zeros((4 * width,), jnp.float32),
            "proj_w": 0.02 * jax.random.normal(bk[3], (4 * width, width), jnp.float32),
            "proj_b": jnp.zeros((width,), jnp.float32),
        })
    p["blocks"] = blocks
    return p


def vit_l2p_forward(params, x, *, patch_size, heads, compute_dtype=None):
    """Forward pass of VisionTransformer_l2p (prompt_pool=False, head_type='token').

    compute_dtype=jnp.bfloat16 casts activations + weights once so the MXU runs its
    fast bf16 path (f32 accumulation); default None keeps fp32 like the torch
    reference.  Note: with bf16, LN statistics come from bf16-cast inputs (slight
    deviation from the torch fp32 path).
    """
    if compute_dtype is not None:
        params = jax.tree_util.tree_map(lambda p: p.astype(compute_dtype), params)
        x = x.astype(compute_dtype)

    B, C, H, W = x.shape
    width = params["conv1_w"].shape[0]
    Hp, Wp = H // patch_size, W // patch_size
    num_patches = Hp * Wp

    # conv1 (stride == kernel == patch_size, no bias) as im2col + Pallas matmul.
    patches = x.reshape(B, C, Hp, patch_size, Wp, patch_size)
    patches = patches.transpose(0, 2, 4, 1, 3, 5)               # (B, Hp, Wp, C, p, p)
    patches = patches.reshape(B * num_patches, C * patch_size * patch_size)
    conv_w = params["conv1_w"].reshape(width, -1).T             # (C*p*p, width)
    pe = fused_matmul(patches, conv_w)                          # (B*num_patches, width)
    pe = pe.reshape(B, num_patches, width)

    res = {}  # prompt_pool=False branch of the forward

    # cls-token prepend + positional embedding + ln_pre fused in one Pallas pass.
    x3 = embed_ln_pre(pe, params["class_embedding"],
                      params["positional_embedding"],
                      params["ln_pre_g"], params["ln_pre_b"])
    L = x3.shape[1]
    head_dim = width // heads
    scale = 1.0 / float(head_dim) ** 0.5

    x2 = x3.reshape(B * L, width)
    for blk in params["blocks"]:
        # --- multi-head self-attention (LN fused into QKV, residual into out-proj) ---
        qkv = fused_matmul(x2, blk["qkv_w"], blk["qkv_b"],
                           ln_g=blk["ln1_g"], ln_b=blk["ln1_b"])
        attn = multihead_attention(qkv.reshape(B, L, 3 * width), heads, scale)
        x2 = fused_matmul(attn.reshape(B * L, width), blk["out_w"], blk["out_b"],
                          residual=x2)
        # --- MLP (LN fused into c_fc, QuickGELU fused, residual fused into c_proj) ---
        h = fused_matmul(x2, blk["fc_w"], blk["fc_b"],
                         ln_g=blk["ln2_g"], ln_b=blk["ln2_b"],
                         activation="quick_gelu")
        x2 = fused_matmul(h, blk["proj_w"], blk["proj_b"], residual=x2)

    # ln_post fused into the output projection (no bias).
    out_dim = params["proj"].shape[1]
    xo = fused_matmul(x2, params["proj"],
                      ln_g=params["ln_post_g"], ln_b=params["ln_post_b"])
    xo = xo.reshape(B, L, out_dim)
    res["x"] = xo

    # head_type == 'token'
    tok = xo[:, 0]                                              # (B, output_dim)
    res["pre_logits"] = tok

    # fc_norm fused into the classification head matmul; pad N to a lane-dense
    # 128-multiple (unmasked stores) and slice afterwards.
    num_classes = params["head_w"].shape[1]
    n_pad = (-num_classes) % 128
    head_w = params["head_w"]
    head_b = params["head_b"]
    if n_pad:
        head_w = jnp.pad(head_w, ((0, 0), (0, n_pad)))
        head_b = jnp.pad(head_b, ((0, n_pad),))
    logits = fused_matmul(tok, head_w, head_b,
                          ln_g=params["fc_norm_g"], ln_b=params["fc_norm_b"])
    res["logits"] = logits[:, :num_classes]
    return res


# ----------------------------------------- main -------------------------------------- #

if __name__ == "__main__":
    # Small, forward-consistent shapes.
    input_resolution = 16
    patch_size = 4
    width = 32
    layers = 2
    heads = 4
    output_dim = 16
    num_classes = 10
    batch = 2

    key = jax.random.PRNGKey(0)
    pkey, xkey = jax.random.split(key)
    params = init_params(
        pkey,
        input_resolution=input_resolution,
        patch_size=patch_size,
        width=width,
        layers=layers,
        heads=heads,
        output_dim=output_dim,
        num_classes=num_classes,
    )
    x = jax.random.normal(xkey, (batch, 3, input_resolution, input_resolution),
                          jnp.float32)

    # fp32 run (matches torch reference semantics).
    res = vit_l2p_forward(params, x, patch_size=patch_size, heads=heads)
    jax.block_until_ready(res["logits"])

    # bf16-operand run (fast MXU path on v5e/v6e/v7x, fp32 accumulation).
    res_bf16 = vit_l2p_forward(params, x, patch_size=patch_size, heads=heads,
                               compute_dtype=jnp.bfloat16)
    jax.block_until_ready(res_bf16["logits"])

    num_patches = (input_resolution // patch_size) ** 2
    assert res["x"].shape == (batch, num_patches + 1, output_dim)
    assert res["pre_logits"].shape == (batch, output_dim)
    assert res["logits"].shape == (batch, num_classes)
    assert res_bf16["logits"].shape == (batch, num_classes)
    print("KERNEL_OK")
</pallas_src>

<mosaic_0001>
module attributes {stable_mosaic.version = 11 : i64} {
  func.func @kernel(%arg0: i32, %arg1: memref<32x48xf32, #tpu.memory_space<vmem>>, %arg2: memref<48x32xf32, #tpu.memory_space<vmem>>, %arg3: memref<32x32xf32, #tpu.memory_space<vmem>>) attributes {dimension_semantics = [#tpu.dimension_semantics<parallel>], iteration_bounds = array<i64: 1>, scalar_prefetch = 0 : i64, scratch_operands = 0 : i64, tpu.core_type = #tpu.core_type<tc>, window_params = [{transform_indices = @transform_0, window_bounds = array<i64: 32, 48>}, {pipeline_mode = #tpu.pipeline_mode<synchronous>, transform_indices = @transform_1, window_bounds = array<i64: 48, 32>}, {transform_indices = @transform_2, window_bounds = array<i64: 32, 32>}]} {
    %c0 = arith.constant 0 : index
    %c0_0 = arith.constant 0 : index
    %0 = vector.load %arg1[%c0, %c0_0] : memref<32x48xf32, #tpu.memory_space<vmem>>, vector<32x48xf32>
    %c0_1 = arith.constant 0 : index
    %c0_2 = arith.constant 0 : index
    %1 = vector.load %arg2[%c0_1, %c0_2] : memref<48x32xf32, #tpu.memory_space<vmem>>, vector<48x32xf32>
    %cst = arith.constant dense<0.000000e+00> : vector<32x32xf32>
    %2 = tpu.matmul %0, %1, %cst {dimension_numbers = #tpu.dot_dimension_numbers<[1], [0], [0], [1], [0, 0, 1, 1], [], []>} : vector<32x48xf32>, vector<48x32xf32>, vector<32x32xf32> -> vector<32x32xf32>
    %c0_3 = arith.constant 0 : index
    %c0_4 = arith.constant 0 : index
    %3 = vector.load %arg3[%c0_3, %c0_4] : memref<32x32xf32, #tpu.memory_space<vmem>>, vector<32x32xf32>
    tpu.vector_store %arg3[%c0_3, %c0_4], %2 {strides = array<i32>} : memref<32x32xf32, #tpu.memory_space<vmem>>, vector<32x32xf32>,
    return
  }
  func.func @transform_0(%arg0: i32) -> (i32, i32) {
    %c0_i32 = arith.constant 0 : i32
    %c0_i32_0 = arith.constant 0 : i32
    return %arg0, %c0_i32 : i32, i32
  }
  func.func @transform_1(%arg0: i32) -> (i32, i32) {
    %c0_i32 = arith.constant 0 : i32
    %c0_i32_0 = arith.constant 0 : i32
    %c0_i32_1 = arith.constant 0 : i32
    return %c0_i32, %c0_i32_0 : i32, i32
  }
  func.func @transform_2(%arg0: i32) -> (i32, i32) {
    %c0_i32 = arith.constant 0 : i32
    %c0_i32_0 = arith.constant 0 : i32
    return %arg0, %c0_i32 : i32, i32
  }
}

</mosaic_0001>

<llo_original>
// kernel: tpu_custom_call.1
$region0: #{tpu_custom_call.1}
  #allocation0 [shape = 'u32[]', space=smem, size = 0x4, offset = 0x4, fixed_abs, tag = 'smem constant byte address 0x4 - core index']
  #allocation1 [shape = 'u32[72,128]{1,0:T(1,128)}', space=vmem, size = 0x9000, scoped, tag = 'internal scratch']
  %s0 = inlined_call_operand.vmem [shape: f32[32,48], index: 0, kind: input, shape index: {}]
  %s1 = inlined_call_operand.vmem [shape: f32[48,32], index: 1, kind: input, shape index: {}]
  %s2 = inlined_call_operand.hbm [shape: f32[32,32], index: 2, kind: output, shape index: {}]
  %s3 = sld [smem:[#allocation0]]
  $region18: #{tpu_custom_call.1} parent=0
    _
  %s5 = ssub.s32 1, %s3
  %s6 = scalar_select 0, %s5, %s3
  $region1: #{tpu_custom_call.1} parent=0
    #allocation2 [shape = 'u8[16384]{0}', space=vmem, size = 0x4000, scoped, tag = 'output window, operand 0, single buffered']
    #allocation3 [shape = 's32[1]{0}', space=sflag, size = 0x4, scoped, tag = 'scoped memory for tpu_custom_call.1']
    %7 = vsyncpa [#allocation3], 0
    // Predicated region
    $region2: #{tpu_custom_call.1} parent=1 // pred_check
      _
    $region3: #{tpu_custom_call.1} parent=1 // pred_check_branch
      %9 = sbr.rel (0) target = $region5
    $region4: #{tpu_custom_call.1} parent=1 // pred_region
      _
    $region5: #{tpu_custom_call.1} parent=1 // pred_fallthru
      _
    // Predicated region
    $region6: #{tpu_custom_call.1} parent=1 // pred_check
      _
    $region7: #{tpu_custom_call.1} parent=1 // pred_check_branch
      %11 = sbr.rel (0) target = $region9
    $region8: #{tpu_custom_call.1} parent=1 // pred_region
      _
    $region9: #{tpu_custom_call.1} parent=1 // pred_fallthru
      _
    %v12 = vld [vmem:[%s0] sm:$0xff]
    %v13 = vld [vmem:[%s0 + $0x8] sm:$0xff]
    %v14 = vld [vmem:[%s0 + $0x10] sm:$0xff]
    %v15 = vld [vmem:[%s0 + $0x18] sm:$0xff]
    %v16 = vld [vmem:[%s1] sm:$0xff]
    %v17 = vld [vmem:[%s1 + $0x8] sm:$0xff]
    %v18 = vld [vmem:[%s1 + $0x10] sm:$0xff]
    %v19 = vld [vmem:[%s1 + $0x18] sm:$0xff]
    %v20 = vld [vmem:[%s1 + $0x20] sm:$0xff]
    %v21 = vld [vmem:[%s1 + $0x28] sm:$0xff]
    %vm22 = vcmask 392192
    %v24 = vsel %vm22, %v12, 0
    %v27 = vsel %vm22, %v13, 0
    %v30 = vsel %vm22, %v14, 0
    %v33 = vsel %vm22, %v15, 0
    %35 = vmatpush.msra.mxu0 0.0
    %36 = vmatpush.msra.mxu0 0.0
    %37 = vmatpush.msra.mxu0 0.0
    %38 = vmatpush.msra.mxu0 0.0
    %39 = vmatpush.msra.mxu0 0.0
    %40 = vmatpush.msra.mxu0 0.0
    %41 = vmatpush.msra.mxu0 0.0
    %42 = vmatpush.msra.mxu0 0.0
    %43 = vmatpush.msra.mxu0 0.0
    %44 = vmatpush.msra.mxu0 0.0
    %45 = vmatpush.msra.mxu0 %v21
    %46 = vmatpush.msra.mxu0 %v20
    %47 = vmatpush.msra.mxu0 %v19
    %48 = vmatpush.msra.mxu0 %v18
    %49 = vmatpush.msra.mxu0 %v17
    %50 = vmatpush.msra.mxu0 %v16
    %51 = vmatmul.f32.gmra.mxu0 %v24
    %v52 = vpop.f32.mrf.mxu0
    %v53 = vadd.f32 0.0, %v52
    %54 = vmatmul.f32.gmra.mxu0 %v27
    %v55 = vpop.f32.mrf.mxu0
    %v56 = vadd.f32 0.0, %v55
    %57 = vmatmul.f32.gmra.mxu0 %v30
    %v58 = vpop.f32.mrf.mxu0
    %v59 = vadd.f32 0.0, %v58
    %60 = vmatmul.f32.gmra.mxu0 %v33
    %v61 = vpop.f32.mrf.mxu0
    %v62 = vadd.f32 0.0, %v61
    %63 = vdwg.mxu0
    %vm64 = vcmask 261120
    %65 = vst.msk [vmem:[#allocation2] sm:$0xff] %vm64, %v53
    %66 = vst.msk [vmem:[#allocation2 + $0x8] sm:$0xff] %vm64, %v56
    %67 = vst.msk [vmem:[#allocation2 + $0x10] sm:$0xff] %vm64, %v59
    %68 = vst.msk [vmem:[#allocation2 + $0x18] sm:$0xff] %vm64, %v62
    // Predicated region
    $region10: #{tpu_custom_call.1} parent=1 // pred_check
      _
    $region11: #{tpu_custom_call.1} parent=1 // pred_check_branch
      %70 = sbr.rel (0) target = $region13
    $region12: #{tpu_custom_call.1} parent=1 // pred_region
      %72 = vsyncadd [#allocation3], 0
      %s73 = sshll.u32 [#allocation2], 4
      %s74 = int_to_ptr.vmem [resolvable:$true] %s73
      %s75 = sshll.u32 %s2, 4
      %s76 = int_to_ptr.hbm [resolvable:$true] %s75
      %81 = dma.vmem_to_hbm [thread:$0]  %s74, 512, %s76, [#allocation3], 128, 128, 8
    $region13: #{tpu_custom_call.1} parent=1 // pred_fallthru
      _
    // Predicated region
    $region14: #{tpu_custom_call.1} parent=1 // pred_check
      _
    $region15: #{tpu_custom_call.1} parent=1 // pred_check_branch
      %83 = sbr.rel (0) target = $region17
    $region16: #{tpu_custom_call.1} parent=1 // pred_region
      %85 = dma.done [#allocation3], 512
    $region17: #{tpu_custom_call.1} parent=1 // pred_fallthru
      _
    %86 = vsyncpa [#allocation3], 1

</llo_original>
